<compile_context>
chip_gen: v5e
topology: v5e:2x2
jax: 0.10.0
libtpu: 0.0.40
codegen_flags: <defaults>
</compile_context>

<pallas_src>
import jax
import jax.numpy as jnp
from jax.experimental import pallas as pl
from jax.experimental.pallas import tpu as pltpu


def _round_up(x, m):
    return (x + m - 1) // m * m


def _bpr_tile_kernel(idx_ref,     # (1, 8, TILE_B) int32; rows 0/1/2 = user/pos/neg
                     uf_t_ref,    # (F, R) whole user table, VMEM-resident
                     if_t_ref,    # (F, R) whole item table, VMEM-resident
                     o_ref):      # (1, TILE_B) f32 output tile
    tile_b = o_ref.shape[1]
    n_rows = uf_t_ref.shape[1]
    mxu_dt = if_t_ref.dtype

    idx = idx_ref[0]                          # (8, TILE_B) int32
    u_idx = idx[0:1, :]                       # (1, TILE_B)
    p_idx = idx[1:2, :]
    n_idx = idx[2:3, :]

    # Single shared iota: built once, compared three times (no CSE in JAX,
    # so building it per one-hot would triple the VALU-dominant phase).
    iota = jax.lax.broadcasted_iota(jnp.int32, (n_rows, tile_b), 0)

    # One-hot selection matrices with the batch on lanes.  Compare/subtract
    # in f32 (v5e has no bf16 VALU); cast once at the MXU operand.
    u_oh = (iota == u_idx).astype(jnp.float32)                    # (R, TILE_B)
    d_oh = ((iota == p_idx).astype(jnp.float32)
            - (iota == n_idx).astype(jnp.float32))                # (R, TILE_B)

    # MXU gathers: table.T @ one_hot -> (F, TILE_B).  Positive/negative item
    # gathers are fused into one matmul via (p_oh - n_oh).  Tables are used
    # in their stored dtype; accumulation is f32.
    u_emb = jnp.dot(uf_t_ref[...], u_oh.astype(mxu_dt),
                    preferred_element_type=jnp.float32)            # (F, TILE_B)
    d_emb = jnp.dot(if_t_ref[...], d_oh.astype(mxu_dt),
                    preferred_element_type=jnp.float32)            # (F, TILE_B)

    # score_j = sum_f u[f,j] * (p - n)[f,j]; sublane reduce, result is
    # naturally lane-dense (1, TILE_B).
    o_ref[...] = jnp.sum(u_emb * d_emb, axis=0, keepdims=True)


def mf_forward(user_factors, item_factors, user, item_p, item_n,
               *, tile_b=512, table_dtype=None):
    """BPR forward: returns (B,) float32 scores.

    table_dtype: optional down-cast for the resident tables (e.g. jnp.bfloat16
    on v6e/v7x to halve table VMEM and feed native bf16 MXU inputs).
    """
    B = user.shape[0]
    n_users, F = user_factors.shape
    n_items, F2 = item_factors.shape
    assert F == F2

    # Lane-dense batch tile; shrink for tiny batches but never below 128.
    tile_b = max(128, min(tile_b, pl.cdiv(B, 128) * 128))
    num_tiles = pl.cdiv(B, tile_b)
    padded_b = num_tiles * tile_b

    # Pack user/pos/neg indices into one (T, 8, TILE_B) array (rows 0-2 used)
    # so each grid step issues one full-sublane index DMA instead of three.
    def prep(idx):
        idx = idx.astype(jnp.int32)
        return jnp.pad(idx, (0, padded_b - B)).reshape(num_tiles, 1, tile_b)

    idx_packed = jnp.concatenate(
        [prep(user), prep(item_p), prep(item_n),
         jnp.zeros((num_tiles, 5, tile_b), jnp.int32)], axis=1)   # (T, 8, TILE_B)

    # Pad BOTH tables to a common lane-friendly row count so one iota serves
    # all three one-hot builds; transpose so the factor axis sits on sublanes
    # and the gathered batch axis lands on lanes (no relayouts in-kernel).
    n_rows = _round_up(max(n_users, n_items), 128)
    dt = jnp.dtype(table_dtype) if table_dtype is not None else user_factors.dtype
    uf_t = jnp.pad(user_factors, ((0, n_rows - n_users), (0, 0))).T.astype(dt)  # (F, R)
    if_t = jnp.pad(item_factors, ((0, n_rows - n_items), (0, 0))).T.astype(dt)  # (F, R)

    # Explicit VMEM budget: resident tables (single-buffered) + one-hot
    # temporaries + double-buffered index/output tiles, with 2x headroom.
    itemsize = jnp.dtype(dt).itemsize
    f_pad = _round_up(F, 8)
    table_bytes = 2 * f_pad * n_rows * itemsize
    onehot_bytes = 5 * n_rows * tile_b * 4          # iota + f32 one-hots (+ casts)
    emb_bytes = 2 * f_pad * tile_b * 4
    io_bytes = 2 * (8 + 8) * tile_b * 4
    vmem_bytes = 2 * (table_bytes + onehot_bytes + emb_bytes + io_bytes) + (4 << 20)
    vmem_bytes = int(min(max(vmem_bytes, 32 << 20), 96 << 20))
    # TODO(synk): clamp to <= 48 MiB and shrink tile_b when targeting v7x (64 MiB/TC).

    idx_spec = pl.BlockSpec((1, 8, tile_b), lambda i: (i, 0, 0))
    table_spec = pl.BlockSpec(memory_space=pltpu.MemorySpace.VMEM)  # whole array, 1 buffer

    out = pl.pallas_call(
        _bpr_tile_kernel,
        out_shape=jax.ShapeDtypeStruct((num_tiles, tile_b), jnp.float32),
        grid_spec=pltpu.PrefetchScalarGridSpec(
            num_scalar_prefetch=0,
            grid=(num_tiles,),
            in_specs=[
                idx_spec,     # packed user/pos/neg indices
                table_spec,   # resident user table (F, R)
                table_spec,   # resident item table (F, R)
            ],
            out_specs=pl.BlockSpec((1, tile_b), lambda i: (i, 0)),
        ),
        compiler_params=pltpu.CompilerParams(
            dimension_semantics=("parallel",),
            vmem_limit_bytes=vmem_bytes),
        cost_estimate=pl.CostEstimate(
            flops=4 * padded_b * n_rows * F + 4 * padded_b * F,
            transcendentals=0,
            bytes_accessed=(table_bytes + 8 * padded_b * 4 + padded_b * 4),
        ),
    )(idx_packed, uf_t, if_t)

    return out.reshape(-1)[:B]


if __name__ == "__main__":
    # Deterministic parameter init (matches nn.Embedding default: N(0, 1)).
    n_users, n_items, n_factors = 16, 32, 20
    batch = 8

    key = jax.random.PRNGKey(0)
    k_u, k_i, k_a, k_b, k_c = jax.random.split(key, 5)
    user_factors = jax.random.normal(k_u, (n_users, n_factors), dtype=jnp.float32)
    item_factors = jax.random.normal(k_i, (n_items, n_factors), dtype=jnp.float32)

    user   = jax.random.randint(k_a, (batch,), 0, n_users,  dtype=jnp.int32)
    item_p = jax.random.randint(k_b, (batch,), 0, n_items,  dtype=jnp.int32)
    item_n = jax.random.randint(k_c, (batch,), 0, n_items,  dtype=jnp.int32)

    # --- f32 tables (matches the PyTorch module's parameter dtype) ---------
    out = jax.block_until_ready(
        mf_forward(user_factors, item_factors, user, item_p, item_n))

    u_e = user_factors[user]
    p_e = item_factors[item_p]
    n_e = item_factors[item_n]
    ref = (u_e * p_e).sum(1) - (u_e * n_e).sum(1)

    assert out.shape == (batch,)
    assert jnp.allclose(out, ref, atol=1e-5, rtol=1e-5)

    # --- bf16 table path (production option: half VMEM, native bf16 MXU) ---
    out_bf16 = jax.block_until_ready(
        mf_forward(user_factors, item_factors, user, item_p, item_n,
                   table_dtype=jnp.bfloat16))
    uf_b = user_factors.astype(jnp.bfloat16).astype(jnp.float32)
    if_b = item_factors.astype(jnp.bfloat16).astype(jnp.float32)
    ref_b = (uf_b[user] * if_b[item_p]).sum(1) - (uf_b[user] * if_b[item_n]).sum(1)
    assert jnp.allclose(out_bf16, ref_b, atol=1e-3, rtol=1e-3)

    print("KERNEL_OK")
</pallas_src>

<mosaic_0001>
module attributes {stable_mosaic.version = 11 : i64} {
  func.func @_bpr_tile_kernel(%arg0: i32, %arg1: memref<1x8x128xi32, #tpu.memory_space<vmem>>, %arg2: memref<20x128xf32, #tpu.memory_space<vmem>>, %arg3: memref<20x128xf32, #tpu.memory_space<vmem>>, %arg4: memref<1x128xf32, #tpu.memory_space<vmem>>) attributes {dimension_semantics = [#tpu.dimension_semantics<parallel>], iteration_bounds = array<i64: 1>, scalar_prefetch = 0 : i64, scratch_operands = 0 : i64, tpu.core_type = #tpu.core_type<tc>, window_params = [{transform_indices = @transform_0, window_bounds = array<i64: 1, 8, 128>}, {pipeline_mode = #tpu.pipeline_mode<synchronous>, transform_indices = @transform_1, window_bounds = array<i64: 20, 128>}, {pipeline_mode = #tpu.pipeline_mode<synchronous>, transform_indices = @transform_2, window_bounds = array<i64: 20, 128>}, {transform_indices = @transform_3, window_bounds = array<i64: 1, 128>}]} {
    %c0 = arith.constant 0 : index
    %c0_0 = arith.constant 0 : index
    %c0_1 = arith.constant 0 : index
    %0 = vector.load %arg1[%c0, %c0_0, %c0_1] : memref<1x8x128xi32, #tpu.memory_space<vmem>>, vector<1x8x128xi32>
    %1 = vector.shape_cast %0 : vector<1x8x128xi32> to vector<8x128xi32>
    %2 = vector.extract_strided_slice %1 {offsets = [0, 0], sizes = [1, 128], strides = [1, 1]} : vector<8x128xi32> to vector<1x128xi32>
    %3 = vector.extract_strided_slice %1 {offsets = [1, 0], sizes = [1, 128], strides = [1, 1]} : vector<8x128xi32> to vector<1x128xi32>
    %4 = vector.extract_strided_slice %1 {offsets = [2, 0], sizes = [1, 128], strides = [1, 1]} : vector<8x128xi32> to vector<1x128xi32>
    %5 = tpu.iota {dimensions = array<i32: 0>} : vector<128x128xi32>
    %6 = vector.broadcast %2 : vector<1x128xi32> to vector<128x128xi32>
    %7 = arith.cmpi eq, %5, %6 : vector<128x128xi32>
    %8 = arith.extui %7 : vector<128x128xi1> to vector<128x128xi32>
    %9 = arith.sitofp %8 : vector<128x128xi32> to vector<128x128xf32>
    %10 = vector.broadcast %3 : vector<1x128xi32> to vector<128x128xi32>
    %11 = arith.cmpi eq, %5, %10 : vector<128x128xi32>
    %12 = arith.extui %11 : vector<128x128xi1> to vector<128x128xi32>
    %13 = arith.sitofp %12 : vector<128x128xi32> to vector<128x128xf32>
    %14 = vector.broadcast %4 : vector<1x128xi32> to vector<128x128xi32>
    %15 = arith.cmpi eq, %5, %14 : vector<128x128xi32>
    %16 = arith.extui %15 : vector<128x128xi1> to vector<128x128xi32>
    %17 = arith.sitofp %16 : vector<128x128xi32> to vector<128x128xf32>
    %18 = arith.subf %13, %17 : vector<128x128xf32>
    %c0_2 = arith.constant 0 : index
    %c0_3 = arith.constant 0 : index
    %19 = vector.load %arg2[%c0_2, %c0_3] : memref<20x128xf32, #tpu.memory_space<vmem>>, vector<20x128xf32>
    %cst = arith.constant dense<0.000000e+00> : vector<20x128xf32>
    %20 = tpu.matmul %19, %9, %cst {dimension_numbers = #tpu.dot_dimension_numbers<[1], [0], [0], [1], [0, 0, 1, 1], [], []>} : vector<20x128xf32>, vector<128x128xf32>, vector<20x128xf32> -> vector<20x128xf32>
    %c0_4 = arith.constant 0 : index
    %c0_5 = arith.constant 0 : index
    %21 = vector.load %arg3[%c0_4, %c0_5] : memref<20x128xf32, #tpu.memory_space<vmem>>, vector<20x128xf32>
    %cst_6 = arith.constant dense<0.000000e+00> : vector<20x128xf32>
    %22 = tpu.matmul %21, %18, %cst_6 {dimension_numbers = #tpu.dot_dimension_numbers<[1], [0], [0], [1], [0, 0, 1, 1], [], []>} : vector<20x128xf32>, vector<128x128xf32>, vector<20x128xf32> -> vector<20x128xf32>
    %23 = arith.mulf %20, %22 : vector<20x128xf32>
    %cst_7 = arith.constant dense<0.000000e+00> : vector<128xf32>
    %24 = vector.multi_reduction <add>, %23, %cst_7 [0] : vector<20x128xf32> to vector<128xf32>
    %25 = vector.shape_cast %24 : vector<128xf32> to vector<1x128xf32>
    %c0_8 = arith.constant 0 : index
    %c0_9 = arith.constant 0 : index
    %26 = vector.load %arg4[%c0_8, %c0_9] : memref<1x128xf32, #tpu.memory_space<vmem>>, vector<1x128xf32>
    tpu.vector_store %arg4[%c0_8, %c0_9], %25 {strides = array<i32>} : memref<1x128xf32, #tpu.memory_space<vmem>>, vector<1x128xf32>,
    return
  }
  func.func @transform_0(%arg0: i32) -> (i32, i32, i32) {
    %c0_i32 = arith.constant 0 : i32
    %c0_i32_0 = arith.constant 0 : i32
    %c0_i32_1 = arith.constant 0 : i32
    return %arg0, %c0_i32, %c0_i32_0 : i32, i32, i32
  }
  func.func @transform_1(%arg0: i32) -> (i32, i32) {
    %c0_i32 = arith.constant 0 : i32
    %c0_i32_0 = arith.constant 0 : i32
    %c0_i32_1 = arith.constant 0 : i32
    return %c0_i32, %c0_i32_0 : i32, i32
  }
  func.func @transform_2(%arg0: i32) -> (i32, i32) {
    %c0_i32 = arith.constant 0 : i32
    %c0_i32_0 = arith.constant 0 : i32
    %c0_i32_1 = arith.constant 0 : i32
    return %c0_i32, %c0_i32_0 : i32, i32
  }
  func.func @transform_3(%arg0: i32) -> (i32, i32) {
    %c0_i32 = arith.constant 0 : i32
    %c0_i32_0 = arith.constant 0 : i32
    return %arg0, %c0_i32 : i32, i32
  }
}

</mosaic_0001>

<llo_original>
// kernel: tpu_custom_call.1
$region0: #{tpu_custom_call.1}
  #allocation0 [shape = 'u32[]', space=smem, size = 0x4, offset = 0x4, fixed_abs, tag = 'smem constant byte address 0x4 - core index']
  #allocation1 [shape = 'u32[72,128]{1,0:T(1,128)}', space=vmem, size = 0x9000, scoped, tag = 'internal scratch']
  %s0 = inlined_call_operand.hbm [shape: s32[1,8,128], index: 0, kind: input, shape index: {}]
  %s1 = inlined_call_operand.hbm [shape: f32[20,128], index: 1, kind: input, shape index: {}]
  %s2 = inlined_call_operand.hbm [shape: f32[20,128], index: 2, kind: input, shape index: {}]
  %s3 = inlined_call_operand.hbm [shape: f32[1,128], index: 3, kind: output, shape index: {}]
  %s4 = sld [smem:[#allocation0]]
  $region34: #{tpu_custom_call.1} parent=0
    _
  %s6 = ssub.s32 1, %s4
  %s7 = scalar_select 0, %s6, %s4
  $region1: #{tpu_custom_call.1} parent=0
    #allocation2 [shape = 'u8[4096]{0}', space=vmem, size = 0x1000, scoped, tag = 'input window, operand 0, single buffered']
    #allocation3 [shape = 's32[1]{0}', space=sflag, size = 0x4, scoped, tag = 'scoped memory for tpu_custom_call.1']
    #allocation4 [shape = 's32[1]{0}', space=sflag, size = 0x4, scoped, tag = 'scoped memory for tpu_custom_call.1']
    #allocation5 [shape = 'u8[12288]{0}', space=vmem, size = 0x3000, scoped, tag = 'input window, operand 1, single buffered']
    #allocation6 [shape = 's32[1]{0}', space=sflag, size = 0x4, scoped, tag = 'scoped memory for tpu_custom_call.1']
    #allocation7 [shape = 'u8[12288]{0}', space=vmem, size = 0x3000, scoped, tag = 'input window, operand 2, single buffered']
    #allocation8 [shape = 'u8[512]{0}', space=vmem, size = 0x400, scoped, tag = 'output window, operand 0, single buffered']
    %8 = vsyncpa [#allocation3], 0
    %9 = vsyncpa [#allocation6], 0
    %10 = vsyncpa [#allocation4], 0
    // Predicated region
    $region2: #{tpu_custom_call.1} parent=1 // pred_check
      _
    $region3: #{tpu_custom_call.1} parent=1 // pred_check_branch
      %12 = sbr.rel (0) target = $region5
    $region4: #{tpu_custom_call.1} parent=1 // pred_region
      %14 = vsyncadd [#allocation3], 0
      %s16 = sshll.u32 %s0, 4
      %s17 = int_to_ptr.hbm [resolvable:$true] %s16
      %s18 = sshll.u32 [#allocation2], 4
      %s19 = int_to_ptr.vmem [resolvable:$true] %s18
      %21 = dma.hbm_to_vmem [thread:$0]  %s17, 128, %s19, [#allocation3]
    $region5: #{tpu_custom_call.1} parent=1 // pred_fallthru
      _
    // Predicated region
    $region6: #{tpu_custom_call.1} parent=1 // pred_check
      _
    $region7: #{tpu_custom_call.1} parent=1 // pred_check_branch
      %23 = sbr.rel (0) target = $region9
    $region8: #{tpu_custom_call.1} parent=1 // pred_region
      %25 = vsyncadd [#allocation6], 0
      %s26 = sshll.u32 %s1, 4
      %s27 = int_to_ptr.hbm [resolvable:$true] %s26
      %s28 = sshll.u32 [#allocation5], 4
      %s29 = int_to_ptr.vmem [resolvable:$true] %s28
      %34 = dma.hbm_to_vmem [thread:$0]  %s27, 384, %s29, [#allocation6], 128, 128, 8
    $region9: #{tpu_custom_call.1} parent=1 // pred_fallthru
      _
    // Predicated region
    $region10: #{tpu_custom_call.1} parent=1 // pred_check
      _
    $region11: #{tpu_custom_call.1} parent=1 // pred_check_branch
      %36 = sbr.rel (0) target = $region13
    $region12: #{tpu_custom_call.1} parent=1 // pred_region
      %38 = vsyncadd [#allocation6], 0
      %s39 = sshll.u32 %s2, 4
      %s40 = int_to_ptr.hbm [resolvable:$true] %s39
      %s41 = sshll.u32 [#allocation7], 4
      %s42 = int_to_ptr.vmem [resolvable:$true] %s41
      %47 = dma.hbm_to_vmem [thread:$0]  %s40, 384, %s42, [#allocation6], 128, 128, 8
    $region13: #{tpu_custom_call.1} parent=1 // pred_fallthru
      _
    // Predicated region
    $region14: #{tpu_custom_call.1} parent=1 // pred_check
      _
    $region15: #{tpu_custom_call.1} parent=1 // pred_check_branch
      %49 = sbr.rel (0) target = $region17
    $region16: #{tpu_custom_call.1} parent=1 // pred_region
      %51 = dma.done [#allocation3], 128
    $region17: #{tpu_custom_call.1} parent=1 // pred_fallthru
      _
    // Predicated region
    $region18: #{tpu_custom_call.1} parent=1 // pred_check
      _
    $region19: #{tpu_custom_call.1} parent=1 // pred_check_branch
      %53 = sbr.rel (0) target = $region21
    $region20: #{tpu_custom_call.1} parent=1 // pred_region
      %55 = dma.done [#allocation6], 384
    $region21: #{tpu_custom_call.1} parent=1 // pred_fallthru
      _
    // Predicated region
    $region22: #{tpu_custom_call.1} parent=1 // pred_check
      _
    $region23: #{tpu_custom_call.1} parent=1 // pred_check_branch
      %57 = sbr.rel (0) target = $region25
    $region24: #{tpu_custom_call.1} parent=1 // pred_region
      %59 = dma.done [#allocation6], 384
    $region25: #{tpu_custom_call.1} parent=1 // pred_fallthru
      _
    %v60 = vld [vmem:[#allocation2] sm:$0xff]
    %v61 = vlaneseq
    %v62 = vshrl.u32 %v61, 7
    %v63 = vadd.s32 %v62, 8
    %v64 = vadd.s32 %v62, 16
    %v65 = vadd.s32 %v62, 24
    %v66 = vadd.s32 %v62, 32
    %v67 = vadd.s32 %v62, 40
    %v68 = vadd.s32 %v62, 48
    %v69 = vadd.s32 %v62, 56
    %v70 = vadd.s32 %v62, 64
    %v71 = vadd.s32 %v62, 72
    %v72 = vadd.s32 %v62, 80
    %v73 = vadd.s32 %v62, 88
    %v74 = vadd.s32 %v62, 96
    %v75 = vadd.s32 %v62, 104
    %v76 = vadd.s32 %v62, 112
    %v77 = vadd.s32 %v62, 120
    %v78 = vperm.slane %v60, 0
    %vm79 = vcmp.eq.s32.totalorder %v62, %v78
    %vm80 = vcmp.eq.s32.totalorder %v63, %v78
    %vm81 = vcmp.eq.s32.totalorder %v64, %v78
    %vm82 = vcmp.eq.s32.totalorder %v65, %v78
    %vm83 = vcmp.eq.s32.totalorder %v66, %v78
    %vm84 = vcmp.eq.s32.totalorder %v67, %v78
    %vm85 = vcmp.eq.s32.totalorder %v68, %v78
    %vm86 = vcmp.eq.s32.totalorder %v69, %v78
    %vm87 = vcmp.eq.s32.totalorder %v70, %v78
    %vm88 = vcmp.eq.s32.totalorder %v71, %v78
    %vm89 = vcmp.eq.s32.totalorder %v72, %v78
    %vm90 = vcmp.eq.s32.totalorder %v73, %v78
    %vm91 = vcmp.eq.s32.totalorder %v74, %v78
    %vm92 = vcmp.eq.s32.totalorder %v75, %v78
    %vm93 = vcmp.eq.s32.totalorder %v76, %v78
    %vm94 = vcmp.eq.s32.totalorder %v77, %v78
    %v95 = vsel %vm79, 1, 0
    %v96 = vsel %vm80, 1, 0
    %v97 = vsel %vm81, 1, 0
    %v98 = vsel %vm82, 1, 0
    %v99 = vsel %vm83, 1, 0
    %v100 = vsel %vm84, 1, 0
    %v101 = vsel %vm85, 1, 0
    %v102 = vsel %vm86, 1, 0
    %v103 = vsel %vm87, 1, 0
    %v104 = vsel %vm88, 1, 0
    %v105 = vsel %vm89, 1, 0
    %v106 = vsel %vm90, 1, 0
    %v107 = vsel %vm91, 1, 0
    %v108 = vsel %vm92, 1, 0
    %v109 = vsel %vm93, 1, 0
    %v110 = vsel %vm94, 1, 0
    %v111 = vcvt.s32.f32 %v95
    %v112 = vcvt.s32.f32 %v96
    %v113 = vcvt.s32.f32 %v97
    %v114 = vcvt.s32.f32 %v98
    %v115 = vcvt.s32.f32 %v99
    %v116 = vcvt.s32.f32 %v100
    %v117 = vcvt.s32.f32 %v101
    %v118 = vcvt.s32.f32 %v102
    %v119 = vcvt.s32.f32 %v103
    %v120 = vcvt.s32.f32 %v104
    %v121 = vcvt.s32.f32 %v105
    %v122 = vcvt.s32.f32 %v106
    %v123 = vcvt.s32.f32 %v107
    %v124 = vcvt.s32.f32 %v108
    %v125 = vcvt.s32.f32 %v109
    %v126 = vcvt.s32.f32 %v110
    %v127 = vperm.slane %v60, 1
    %vm128 = vcmp.eq.s32.totalorder %v62, %v127
    %vm129 = vcmp.eq.s32.totalorder %v63, %v127
    %vm130 = vcmp.eq.s32.totalorder %v64, %v127
    %vm131 = vcmp.eq.s32.totalorder %v65, %v127
    %vm132 = vcmp.eq.s32.totalorder %v66, %v127
    %vm133 = vcmp.eq.s32.totalorder %v67, %v127
    %vm134 = vcmp.eq.s32.totalorder %v68, %v127
    %vm135 = vcmp.eq.s32.totalorder %v69, %v127
    %vm136 = vcmp.eq.s32.totalorder %v70, %v127
    %vm137 = vcmp.eq.s32.totalorder %v71, %v127
    %vm138 = vcmp.eq.s32.totalorder %v72, %v127
    %vm139 = vcmp.eq.s32.totalorder %v73, %v127
    %vm140 = vcmp.eq.s32.totalorder %v74, %v127
    %vm141 = vcmp.eq.s32.totalorder %v75, %v127
    %vm142 = vcmp.eq.s32.totalorder %v76, %v127
    %vm143 = vcmp.eq.s32.totalorder %v77, %v127
    %v144 = vsel %vm128, 1, 0
    %v145 = vsel %vm129, 1, 0
    %v146 = vsel %vm130, 1, 0
    %v147 = vsel %vm131, 1, 0
    %v148 = vsel %vm132, 1, 0
    %v149 = vsel %vm133, 1, 0
    %v150 = vsel %vm134, 1, 0
    %v151 = vsel %vm135, 1, 0
    %v152 = vsel %vm136, 1, 0
    %v153 = vsel %vm137, 1, 0
    %v154 = vsel %vm138, 1, 0
    %v155 = vsel %vm139, 1, 0
    %v156 = vsel %vm140, 1, 0
    %v157 = vsel %vm141, 1, 0
    %v158 = vsel %vm142, 1, 0
    %v159 = vsel %vm143, 1, 0
    %v160 = vcvt.s32.f32 %v144
    %v161 = vcvt.s32.f32 %v145
    %v162 = vcvt.s32.f32 %v146
    %v163 = vcvt.s32.f32 %v147
    %v164 = vcvt.s32.f32 %v148
    %v165 = vcvt.s32.f32 %v149
    %v166 = vcvt.s32.f32 %v150
    %v167 = vcvt.s32.f32 %v151
    %v168 = vcvt.s32.f32 %v152
    %v169 = vcvt.s32.f32 %v153
    %v170 = vcvt.s32.f32 %v154
    %v171 = vcvt.s32.f32 %v155
    %v172 = vcvt.s32.f32 %v156
    %v173 = vcvt.s32.f32 %v157
    %v174 = vcvt.s32.f32 %v158
    %v175 = vcvt.s32.f32 %v159
    %v176 = vperm.slane %v60, 2
    %vm177 = vcmp.eq.s32.totalorder %v62, %v176
    %vm178 = vcmp.eq.s32.totalorder %v63, %v176
    %vm179 = vcmp.eq.s32.totalorder %v64, %v176
    %vm180 = vcmp.eq.s32.totalorder %v65, %v176
    %vm181 = vcmp.eq.s32.totalorder %v66, %v176
    %vm182 = vcmp.eq.s32.totalorder %v67, %v176
    %vm183 = vcmp.eq.s32.totalorder %v68, %v176
    %vm184 = vcmp.eq.s32.totalorder %v69, %v176
    %vm185 = vcmp.eq.s32.totalorder %v70, %v176
    %vm186 = vcmp.eq.s32.totalorder %v71, %v176
    %vm187 = vcmp.eq.s32.totalorder %v72, %v176
    %vm188 = vcmp.eq.s32.totalorder %v73, %v176
    %vm189 = vcmp.eq.s32.totalorder %v74, %v176
    %vm190 = vcmp.eq.s32.totalorder %v75, %v176
    %vm191 = vcmp.eq.s32.totalorder %v76, %v176
    %vm192 = vcmp.eq.s32.totalorder %v77, %v176
    %v193 = vsel %vm177, 1, 0
    %v194 = vsel %vm178, 1, 0
    %v195 = vsel %vm179, 1, 0
    %v196 = vsel %vm180, 1, 0
    %v197 = vsel %vm181, 1, 0
    %v198 = vsel %vm182, 1, 0
    %v199 = vsel %vm183, 1, 0
    %v200 = vsel %vm184, 1, 0
    %v201 = vsel %vm185, 1, 0
    %v202 = vsel %vm186, 1, 0
    %v203 = vsel %vm187, 1, 0
    %v204 = vsel %vm188, 1, 0
    %v205 = vsel %vm189, 1, 0
    %v206 = vsel %vm190, 1, 0
    %v207 = vsel %vm191, 1, 0
    %v208 = vsel %vm192, 1, 0
    %v209 = vcvt.s32.f32 %v193
    %v210 = vcvt.s32.f32 %v194
    %v211 = vcvt.s32.f32 %v195
    %v212 = vcvt.s32.f32 %v196
    %v213 = vcvt.s32.f32 %v197
    %v214 = vcvt.s32.f32 %v198
    %v215 = vcvt.s32.f32 %v199
    %v216 = vcvt.s32.f32 %v200
    %v217 = vcvt.s32.f32 %v201
    %v218 = vcvt.s32.f32 %v202
    %v219 = vcvt.s32.f32 %v203
    %v220 = vcvt.s32.f32 %v204
    %v221 = vcvt.s32.f32 %v205
    %v222 = vcvt.s32.f32 %v206
    %v223 = vcvt.s32.f32 %v207
    %v224 = vcvt.s32.f32 %v208
    %v225 = vsub.f32 %v160, %v209
    %v226 = vsub.f32 %v161, %v210
    %v227 = vsub.f32 %v162, %v211
    %v228 = vsub.f32 %v163, %v212
    %v229 = vsub.f32 %v164, %v213
    %v230 = vsub.f32 %v165, %v214
    %v231 = vsub.f32 %v166, %v215
    %v232 = vsub.f32 %v167, %v216
    %v233 = vsub.f32 %v168, %v217
    %v234 = vsub.f32 %v169, %v218
    %v235 = vsub.f32 %v170, %v219
    %v236 = vsub.f32 %v171, %v220
    %v237 = vsub.f32 %v172, %v221
    %v238 = vsub.f32 %v173, %v222
    %v239 = vsub.f32 %v174, %v223
    %v240 = vsub.f32 %v175, %v224
    %v241 = vld [vmem:[#allocation5] sm:$0xff]
    %v242 = vld [vmem:[#allocation5 + $0x8] sm:$0xff]
    %v243 = vld [vmem:[#allocation5 + $0x10] sm:$0xf]
    %244 = vmatpush.msra.mxu0 %v126
    %245 = vmatpush.msra.mxu0 %v125
    %246 = vmatpush.msra.mxu0 %v124
    %247 = vmatpush.msra.mxu0 %v123
    %248 = vmatpush.msra.mxu0 %v122
    %249 = vmatpush.msra.mxu0 %v121
    %250 = vmatpush.msra.mxu0 %v120
    %251 = vmatpush.msra.mxu0 %v119
    %252 = vmatpush.msra.mxu0 %v118
    %253 = vmatpush.msra.mxu0 %v117
    %254 = vmatpush.msra.mxu0 %v116
    %255 = vmatpush.msra.mxu0 %v115
    %256 = vmatpush.msra.mxu0 %v114
    %257 = vmatpush.msra.mxu0 %v113
    %258 = vmatpush.msra.mxu0 %v112
    %259 = vmatpush.msra.mxu0 %v111
    %260 = vmatmul.f32.gmra.mxu0 %v241
    %v261 = vpop.f32.mrf.mxu0
    %v262 = vadd.f32 0.0, %v261
    %263 = vmatmul.f32.gmra.mxu0 %v242
    %v264 = vpop.f32.mrf.mxu0
    %v265 = vadd.f32 0.0, %v264
    %266 = vmatmul.f32.gmra.mxu0 %v243
    %v267 = vpop.f32.mrf.mxu0
    %v268 = vadd.f32 0.0, %v267
    %269 = vdwg.mxu0
    %v270 = vld [vmem:[#allocation7] sm:$0xff]
    %v271 = vld [vmem:[#allocation7 + $0x8] sm:$0xff]
    %v272 = vld [vmem:[#allocation7 + $0x10] sm:$0xf]
    %273 = vmatpush.msra.mxu0 %v240
    %274 = vmatpush.msra.mxu0 %v239
    %275 = vmatpush.msra.mxu0 %v238
    %276 = vmatpush.msra.mxu0 %v237
    %277 = vmatpush.msra.mxu0 %v236
    %278 = vmatpush.msra.mxu0 %v235
    %279 = vmatpush.msra.mxu0 %v234
    %280 = vmatpush.msra.mxu0 %v233
    %281 = vmatpush.msra.mxu0 %v232
    %282 = vmatpush.msra.mxu0 %v231
    %283 = vmatpush.msra.mxu0 %v230
    %284 = vmatpush.msra.mxu0 %v229
    %285 = vmatpush.msra.mxu0 %v228
    %286 = vmatpush.msra.mxu0 %v227
    %287 = vmatpush.msra.mxu0 %v226
    %288 = vmatpush.msra.mxu0 %v225
    %289 = vmatmul.f32.gmra.mxu0 %v270
    %v290 = vpop.f32.mrf.mxu0
    %v291 = vadd.f32 0.0, %v290
    %292 = vmatmul.f32.gmra.mxu0 %v271
    %v293 = vpop.f32.mrf.mxu0
    %v294 = vadd.f32 0.0, %v293
    %295 = vmatmul.f32.gmra.mxu0 %v272
    %v296 = vpop.f32.mrf.mxu0
    %v297 = vadd.f32 0.0, %v296
    %298 = vdwg.mxu0
    %v299 = vmul.f32 %v262, %v291
    %v300 = vmul.f32 %v265, %v294
    %v301 = vmul.f32 %v268, %v297
    %v302 = vadd.f32 %v299, %v300
    %vm303 = vcmask 1043456
    %v304 = vsel %vm303, %v301, 0.0
    %v305 = vadd.f32 %v302, %v304
    %v306 = vrot.slane %v305, 4
    %v307 = vadd.f32 %v305, %v306
    %v308 = vrot.slane %v307, 2
    %v309 = vadd.f32 %v307, %v308
    %v310 = vrot.slane %v309, 1
    %v311 = vadd.f32 %v309, %v310
    %312 = vst [vmem:[#allocation8] sm:$0x1] %v311
    // Predicated region
    $region26: #{tpu_custom_call.1} parent=1 // pred_check
      _
    $region27: #{tpu_custom_call.1} parent=1 // pred_check_branch
      %314 = sbr.rel (0) target = $region29
    $region28: #{tpu_custom_call.1} parent=1 // pred_region
      %316 = vsyncadd [#allocation4], 0
      %s318 = sshll.u32 [#allocation8], 4
      %s319 = int_to_ptr.vmem [resolvable:$true] %s318
      %s320 = sshll.u32 %s3, 4
      %s321 = int_to_ptr.hbm [resolvable:$true] %s320
      %323 = dma.vmem_to_hbm [thread:$0]  %s319, 16, %s321, [#allocation4]
    $region29: #{tpu_custom_call.1} parent=1 // pred_fallthru
      _
    // Predicated region
    $region30: #{tpu_custom_call.1} parent=1 // pred_check
      _
    $region31: #{tpu_custom_call.1} parent=1 // pred_check_branch
      %325 = sbr.rel (0) target = $region33
    $region32: #{tpu_custom_call.1} parent=1 // pred_region
      %327 = dma.done [#allocation4], 16
    $region33: #{tpu_custom_call.1} parent=1 // pred_fallthru
      _
    %328 = vsyncpa [#allocation3], 1
    %329 = vsyncpa [#allocation6], 1
    %330 = vsyncpa [#allocation4], 1

</llo_original>
